<compile_context>
chip_gen: v7x
topology: tpu7x:2x2x1
jax: 0.10.0
libtpu: 0.0.40
codegen_flags: <defaults>
</compile_context>

<pallas_src>
import functools

import jax
import jax.numpy as jnp
from jax import lax
from jax.experimental import pallas as pl
from jax.experimental.pallas import tpu as pltpu

P_DROP = 0.1
_GOLDEN = 0x9E3779B9  # 2^32 / golden ratio


def _mix32(x):
    """Single lowbias32 finalizer pass: well-mixed u32 from a u32 counter."""
    x = x ^ (x >> jnp.uint32(16))
    x = x * jnp.uint32(0x7FEB352D)
    x = x ^ (x >> jnp.uint32(15))
    x = x * jnp.uint32(0x846CA68B)
    x = x ^ (x >> jnp.uint32(16))
    return x


def _dropout_kernel(seed_ref, x_ref, o_ref, *, p: float, s_total: int, h: int):
    tile_s = x_ref.shape[0]
    b = pl.program_id(0)   # batch index
    si = pl.program_id(1)  # S-block index

    # Global element index -> stateless counter-based RNG.  Mask depends only
    # on (seed, global position): invariant to tiling and batch splits.
    # Scalar part (batch/block offset) and seed are folded into a per-row
    # (tile_s, 1) offset so only one full-tile integer add feeds the hash.
    base = (b * s_total + si * tile_s) * h                         # int32 scalar
    row = lax.broadcasted_iota(jnp.int32, (tile_s, 1), 0)          # (tile_s, 1)
    seed_off = seed_ref[0].astype(jnp.uint32) * jnp.uint32(_GOLDEN)
    row_off = (base + row * h).astype(jnp.uint32) + seed_off       # (tile_s, 1)

    lane = lax.broadcasted_iota(jnp.int32, (tile_s, h), 1).astype(jnp.uint32)
    bits = _mix32(row_off + lane)                                  # (tile_s, h)

    # Top 31 bits -> uniform int in [0, 2^31); drop iff below p * 2^31.
    r = (bits >> jnp.uint32(1)).astype(jnp.int32)
    threshold = jnp.int32(min(max(int(round(p * (1 << 31))), 0), (1 << 31) - 1))
    keep = r >= threshold

    xv = x_ref[...]                                     # compute in input dtype
    scale = jnp.asarray(1.0 / (1.0 - p), dtype=xv.dtype)
    o_ref[...] = jnp.where(keep, xv * scale, jnp.zeros_like(xv))


def _sublane_multiple(dtype) -> int:
    """Rows per sublane tile: 8 for 32-bit, 16 for 16-bit, 32 for 8-bit."""
    itemsize = jnp.dtype(dtype).itemsize
    return max(8, 32 // itemsize)


def _choose_tile_s(s: int, h: int, dtype, block_bytes: int) -> int:
    """Largest sublane-aligned divisor of S whose block fits the byte budget."""
    sub = _sublane_multiple(dtype)
    if s % sub != 0:
        return s  # full-S block: allowed since it equals the full array dim
    row_bytes = h * jnp.dtype(dtype).itemsize
    max_rows = max(block_bytes // row_bytes, sub)
    if s <= max_rows:
        return s
    best = sub
    for t in range(sub, int(min(s, max_rows)) + 1, sub):
        if s % t == 0:
            best = t
    return best


def dropout_pallas(x: jax.Array, seed: int, p: float = P_DROP,
                   *, block_bytes: int = 2 << 20) -> jax.Array:
    """Training-mode Dropout(p) matching torch.nn.Dropout forward semantics."""
    if p <= 0.0:
        return x
    if p >= 1.0:
        return jnp.zeros_like(x)
    b, s, h = x.shape
    # Counter hash uses 32-bit linear indices; mask would repeat past 2^31.
    assert b * s * h < (1 << 31), "tensor too large for 32-bit dropout counters"

    tile_s = _choose_tile_s(s, h, x.dtype, block_bytes)
    n_s = s // tile_s
    seed_arr = jnp.asarray([seed], dtype=jnp.int32)

    kernel = functools.partial(_dropout_kernel, p=p, s_total=s, h=h)
    return pl.pallas_call(
        kernel,
        out_shape=jax.ShapeDtypeStruct((b, s, h), x.dtype),
        grid_spec=pltpu.PrefetchScalarGridSpec(
            num_scalar_prefetch=1,
            grid=(b, n_s),
            in_specs=[
                pl.BlockSpec((None, tile_s, h),
                             lambda bi, si, seed_ref: (bi, si, 0)),
            ],
            out_specs=pl.BlockSpec((None, tile_s, h),
                                   lambda bi, si, seed_ref: (bi, si, 0)),
        ),
        compiler_params=pltpu.CompilerParams(
            dimension_semantics=("parallel", "parallel")),
    )(seed_arr, x)


if __name__ == "__main__":
    key = jax.random.PRNGKey(0)
    x440 = jax.random.normal(key, (1, 384, 256), dtype=jnp.float32)

    # 96 KiB blocks -> 96-row tiles -> grid (1, 4): exercises the pipelined
    # multi-block path even at this small shape (default budget is 2 MiB).
    x441 = dropout_pallas(x440, seed=0, p=P_DROP, block_bytes=96 * 1024)
    jax.block_until_ready(x441)

    assert x441.shape == x440.shape
    kept = x441 != 0.0
    scale = jnp.float32(1.0 / (1.0 - P_DROP))
    # Kept elements are exactly the input scaled by 1/(1-p); dropped are zero.
    assert jnp.allclose(
        jnp.where(kept, x441, 0.0),
        jnp.where(kept, x440 * scale, 0.0),
        rtol=1e-5, atol=1e-6,
    )
    # Drop fraction should be close to p.
    frac_dropped = 1.0 - float(jnp.mean(kept.astype(jnp.float32)))
    assert 0.05 < frac_dropped < 0.15, frac_dropped
    print("KERNEL_OK")
</pallas_src>

<mosaic_0001>
module attributes {stable_mosaic.version = 11 : i64} {
  func.func @_dropout_kernel(%arg0: i32, %arg1: i32, %arg2: memref<1xi32, #tpu.memory_space<smem>>, %arg3: memref<1x96x256xf32, #tpu.memory_space<vmem>>, %arg4: memref<1x96x256xf32, #tpu.memory_space<vmem>>) attributes {dimension_semantics = [#tpu.dimension_semantics<parallel>, #tpu.dimension_semantics<parallel>], iteration_bounds = array<i64: 1, 4>, scalar_prefetch = 1 : i64, scratch_operands = 0 : i64, tpu.core_type = #tpu.core_type<tc>, window_params = [{transform_indices = @transform_0, window_bounds = array<i64: 1, 96, 256>}, {transform_indices = @transform_1, window_bounds = array<i64: 1, 96, 256>}]} {
    %c384_i32 = arith.constant 384 : i32
    %0 = arith.muli %arg0, %c384_i32 : i32
    %c96_i32 = arith.constant 96 : i32
    %1 = arith.muli %arg1, %c96_i32 : i32
    %2 = arith.addi %0, %1 : i32
    %c256_i32 = arith.constant 256 : i32
    %3 = arith.muli %2, %c256_i32 : i32
    %4 = tpu.iota {dimensions = array<i32: 0>} : vector<96x1xi32>
    %c0 = arith.constant 0 : index
    %5 = memref.load %arg2[%c0] : memref<1xi32, #tpu.memory_space<smem>>
    %c-1640531527_i32 = arith.constant -1640531527 : i32
    %6 = arith.muli %5, %c-1640531527_i32 : i32
    %c256_i32_0 = arith.constant 256 : i32
    %7 = vector.broadcast %c256_i32_0 : i32 to vector<96x1xi32>
    %8 = arith.muli %4, %7 : vector<96x1xi32>
    %9 = vector.broadcast %3 : i32 to vector<96x1xi32>
    %10 = arith.addi %9, %8 : vector<96x1xi32>
    %11 = vector.broadcast %6 : i32 to vector<96x1xi32>
    %12 = arith.addi %10, %11 : vector<96x1xi32>
    %13 = tpu.iota {dimensions = array<i32: 1>} : vector<96x256xi32>
    %14 = vector.broadcast %12 : vector<96x1xi32> to vector<96x256xi32>
    %15 = arith.addi %14, %13 : vector<96x256xi32>
    %c16_i32 = arith.constant 16 : i32
    %16 = vector.broadcast %c16_i32 : i32 to vector<96x256xi32>
    %17 = arith.shrui %15, %16 : vector<96x256xi32>
    %18 = arith.xori %15, %17 : vector<96x256xi32>
    %c2146121005_i32 = arith.constant 2146121005 : i32
    %19 = vector.broadcast %c2146121005_i32 : i32 to vector<96x256xi32>
    %20 = arith.muli %18, %19 : vector<96x256xi32>
    %c15_i32 = arith.constant 15 : i32
    %21 = vector.broadcast %c15_i32 : i32 to vector<96x256xi32>
    %22 = arith.shrui %20, %21 : vector<96x256xi32>
    %23 = arith.xori %20, %22 : vector<96x256xi32>
    %c-2073254261_i32 = arith.constant -2073254261 : i32
    %24 = vector.broadcast %c-2073254261_i32 : i32 to vector<96x256xi32>
    %25 = arith.muli %23, %24 : vector<96x256xi32>
    %c16_i32_1 = arith.constant 16 : i32
    %26 = vector.broadcast %c16_i32_1 : i32 to vector<96x256xi32>
    %27 = arith.shrui %25, %26 : vector<96x256xi32>
    %28 = arith.xori %25, %27 : vector<96x256xi32>
    %c1_i32 = arith.constant 1 : i32
    %29 = vector.broadcast %c1_i32 : i32 to vector<96x256xi32>
    %30 = arith.shrui %28, %29 : vector<96x256xi32>
    %c214748365_i32 = arith.constant 214748365 : i32
    %31 = vector.broadcast %c214748365_i32 : i32 to vector<96x256xi32>
    %32 = arith.cmpi sge, %30, %31 : vector<96x256xi32>
    %c0_2 = arith.constant 0 : index
    %c0_3 = arith.constant 0 : index
    %c0_4 = arith.constant 0 : index
    %33 = vector.load %arg3[%c0_2, %c0_3, %c0_4] : memref<1x96x256xf32, #tpu.memory_space<vmem>>, vector<1x96x256xf32>
    %34 = vector.shape_cast %33 : vector<1x96x256xf32> to vector<96x256xf32>
    %cst = arith.constant 1.11111116 : f32
    %35 = vector.broadcast %cst : f32 to vector<96x256xf32>
    %36 = arith.mulf %34, %35 : vector<96x256xf32>
    %cst_5 = arith.constant 0.000000e+00 : f32
    %37 = vector.broadcast %cst_5 : f32 to vector<96x256xf32>
    %38 = arith.select %32, %36, %37 : vector<96x256xi1>, vector<96x256xf32>
    %c0_6 = arith.constant 0 : index
    %c0_7 = arith.constant 0 : index
    %c0_8 = arith.constant 0 : index
    %39 = vector.load %arg4[%c0_6, %c0_7, %c0_8] : memref<1x96x256xf32, #tpu.memory_space<vmem>>, vector<1x96x256xf32>
    %40 = vector.shape_cast %39 : vector<1x96x256xf32> to vector<96x256xf32>
    %41 = vector.shape_cast %38 : vector<96x256xf32> to vector<1x96x256xf32>
    tpu.vector_store %arg4[%c0_6, %c0_7, %c0_8], %41 {strides = array<i32>} : memref<1x96x256xf32, #tpu.memory_space<vmem>>, vector<1x96x256xf32>,
    return
  }
  func.func @transform_0(%arg0: i32, %arg1: i32, %arg2: memref<1xi32, #tpu.memory_space<smem>>) -> (i32, i32, i32) {
    %c0_i32 = arith.constant 0 : i32
    %c0_i32_0 = arith.constant 0 : i32
    return %arg0, %arg1, %c0_i32 : i32, i32, i32
  }
  func.func @transform_1(%arg0: i32, %arg1: i32, %arg2: memref<1xi32, #tpu.memory_space<smem>>) -> (i32, i32, i32) {
    %c0_i32 = arith.constant 0 : i32
    %c0_i32_0 = arith.constant 0 : i32
    return %arg0, %arg1, %c0_i32 : i32, i32, i32
  }
}

</mosaic_0001>

<llo_original>
// kernel: tpu_custom_call.1
$region0: #{tpu_custom_call.1}
  #allocation0 [shape = 'u32[]', space=smem, size = 0x4, offset = 0x4, fixed_abs, tag = 'smem constant byte address 0x4 - core index']
  #allocation1 [shape = 'u32[144,128]{1,0:T(1,128)}', space=vmem, size = 0x12000, scoped, tag = 'internal scratch']
  #allocation2 [shape = 's32[1]{0}', space=sflag, size = 0x4, scoped, tag = 'scoped memory for tpu_custom_call.1']
  #allocation3 [shape = 's32[1]{0:T(128)S(6)}', space=smem, size = 0x200, scoped, tag = 'prefetched SMEM operand 0']
  %s0 = inlined_call_operand.<no memory space> [shape: s32[1], index: 0, kind: input, shape index: {}]
  %s1 = inlined_call_operand.hbm [shape: f32[1,384,256], index: 1, kind: input, shape index: {}]
  %s2 = inlined_call_operand.hbm [shape: f32[1,384,256], index: 2, kind: output, shape index: {}]
  %s3 = sld [smem:[#allocation0]]
  $region41: #{tpu_custom_call.1} parent=0
    _
  %s5 = ssub.s32 1, %s3
  %s6 = scalar_select 0, %s5, %s3
  %7 = sst [smem:[#allocation3]] %s0
  $region1: #{tpu_custom_call.1} parent=0
    #allocation4 [shape = 'u8[196608]{0}', space=vmem, size = 0x30000, scoped, tag = 'input window, operand 1']
    #allocation5 [shape = 's32[2]{0}', space=sflag, size = 0x8, scoped, tag = 'scoped memory for tpu_custom_call.1']
    #allocation6 [shape = 's32[2]{0}', space=sflag, size = 0x8, scoped, tag = 'scoped memory for tpu_custom_call.1']
    #allocation7 [shape = 'u8[196608]{0}', space=vmem, size = 0x30000, scoped, tag = 'output window, operand 0']
    %8 = vsyncpa [#allocation5], 0
    %s9 = scalar_lea.sflag [#allocation5], 1
    %10 = vsyncpa %s9, 0
    %11 = vsyncpa [#allocation6], 0
    %s12 = scalar_lea.sflag [#allocation6], 1
    %13 = vsyncpa %s12, 0
    loop: start=0, step=1, limit=6
    $region2: #{tpu_custom_call.1} parent=1 // loop_pre_header
      _
    $region3: #{tpu_custom_call.1} parent=1 // loop_header
      %s15 = sphi 0, %s19
      %p16 = scmp.ge.s32.totalorder %s15, 6
      %s22 = sphi 0, %s34
      %s23 = sphi 0, %s30
      %s24 = sphi 0, %s22
      %s25 = sphi 0, %s23
      %s26 = sphi 0, %s24
      %s27 = sphi 0, %s25
      %s39 = sphi 0, %s41
      %s42 = sphi 0, %s39
      %s43 = sphi 0, %s42
      %s59 = sphi 0, %s43
      %s67 = sphi 0, %s69
      %s70 = sphi 0, %s67
      %s71 = sphi 0, %s70
      %s87 = sphi 0, %s71
    $region4: #{tpu_custom_call.1} parent=1 // loop_header_branch
      %18 = sbr.rel (%p16) target = $region8
    $region5: #{tpu_custom_call.1} parent=1 // loop_body
      %s20 = ssub.s32 %s15, 1
      %s21 = ssub.s32 %s15, 2
      %s28 = sadd.s32 1, %s23
      %p29 = scmp.ge.s32.totalorder %s28, 4
      %s30 = scalar_select %p29, 0, %s28
      %s31 = sadd.s32 1, %s22
      %s32 = scalar_select %p29, %s31, %s22
      %p33 = scmp.ge.s32.totalorder %s32, 1
      %s34 = scalar_select %p33, 0, %s32
      %s35 = ssub.s32 %s22, %s34
      %s36 = ssub.s32 %s23, %s30
      %s37 = sor.u32 %s35, %s36
      %p38 = scmp.eq.s32.totalorder %s37, 0
      %s40 = sadd.s32 %s39, 1
      %s41 = scalar_select %p38, %s39, %s40
      %p44 = pneg %p38
      %p45 = scmp.eq.s32.totalorder %s15, 3
      %p46 = por %p44, %p45
      %p47 = scmp.ne.s32.totalorder %s39, %s42
      %p48 = scmp.eq.s32.totalorder %s15, 0
      %p49 = por %p47, %p48
      %p50 = scmp.ne.s32.totalorder %s39, %s42
      %p51 = scmp.eq.s32.totalorder %s20, 3
      %p52 = por %p50, %p51
      %p53 = scmp.ne.s32.totalorder %s42, %s43
      %p54 = scmp.eq.s32.totalorder %s20, 0
      %p55 = por %p53, %p54
      %p56 = scmp.ne.s32.totalorder %s42, %s43
      %p57 = scmp.eq.s32.totalorder %s21, 3
      %p58 = por %p56, %p57
      %p60 = scmp.ne.s32.totalorder %s43, %s59
      %p61 = scmp.eq.s32.totalorder %s21, 0
      %p62 = por %p60, %p61
      %s63 = ssub.s32 %s22, %s34
      %s64 = ssub.s32 %s23, %s30
      %s65 = sor.u32 %s63, %s64
      %p66 = scmp.eq.s32.totalorder %s65, 0
      %s68 = sadd.s32 %s67, 1
      %s69 = scalar_select %p66, %s67, %s68
      %p72 = pneg %p66
      %p73 = scmp.eq.s32.totalorder %s15, 3
      %p74 = por %p72, %p73
      %p75 = scmp.ne.s32.totalorder %s67, %s70
      %p76 = scmp.eq.s32.totalorder %s15, 0
      %p77 = por %p75, %p76
      %p78 = scmp.ne.s32.totalorder %s67, %s70
      %p79 = scmp.eq.s32.totalorder %s20, 3
      %p80 = por %p78, %p79
      %p81 = scmp.ne.s32.totalorder %s70, %s71
      %p82 = scmp.eq.s32.totalorder %s20, 0
      %p83 = por %p81, %p82
      %p84 = scmp.ne.s32.totalorder %s70, %s71
      %p85 = scmp.eq.s32.totalorder %s21, 3
      %p86 = por %p84, %p85
      %p88 = scmp.ne.s32.totalorder %s71, %s87
      %p89 = scmp.eq.s32.totalorder %s21, 0
      %p90 = por %p88, %p89
      %p91 = scmp.le.s32.totalorder 1, %s15
      %p92 = scmp.lt.s32.totalorder %s15, 5
      %p93 = pnand %p91, %p92
      %p94 = pneg %p93
      // Predicated region
      $region9: #{tpu_custom_call.1} parent=5 // pred_check
        _
      $region10: #{tpu_custom_call.1} parent=5 // pred_check_branch
        %96 = sbr.rel (%p93) target = $region12
      $region11: #{tpu_custom_call.1} parent=5 // pred_region
        %s97 = ssub.s32 %s15, 1
      $region12: #{tpu_custom_call.1} parent=5 // pred_fallthru
        _
      %p98 = scmp.lt.s32.totalorder %s15, 4
      // Predicated region
      $region13: #{tpu_custom_call.1} parent=5 // pred_check
        %p99 = pneg %p98
      $region14: #{tpu_custom_call.1} parent=5 // pred_check_branch
        %101 = sbr.rel (%p99) target = $region16
      $region15: #{tpu_custom_call.1} parent=5 // pred_region
        // Predicated region
        $region17: #{tpu_custom_call.1} parent=15 // pred_check
          %p102 = pneg %p49
        $region18: #{tpu_custom_call.1} parent=15 // pred_check_branch
          %104 = sbr.rel (%p102) target = $region20
        $region19: #{tpu_custom_call.1} parent=15 // pred_region
          %s105 = sand.u32 %s39, 1
          %s106 = scalar_lea.sflag [#allocation5], %s105
          %s107 = sand.u32 %s39, 1
          %s108 = smul.addr %s107, 192
          %s109 = scalar_lea.vmem [#allocation4], %s108
          %s110 = smul.u32 12, %s23
          %s112 = ssub.s32 3072, 3072
          %113 = vsyncadd %s106, %s112
          %s114 = smul.addr %s110, 2
          %s115 = smul.addr %s22, 96
          %s116 = sadd.s32 %s114, %s115
          %s117 = smul.addr %s116, 128
          %s118 = scalar_lea.hbm %s1, %s117
          %s119 = sshll.u32 %s109, 4
          %s120 = int_to_ptr.vmem [resolvable:$true] %s119
          %125 = dma.hbm_to_vmem [thread:$0]  %s118, 3072, %s120, %s106, 256, 256, 16
        $region20: #{tpu_custom_call.1} parent=15 // pred_fallthru
          _
      $region16: #{tpu_custom_call.1} parent=5 // pred_fallthru
        _
      %p126 = scmp.le.s32.totalorder 1, %s15
      %p127 = scmp.lt.s32.totalorder %s15, 5
      %p128 = pnand %p126, %p127
      %p129 = pneg %p128
      // Predicated region
      $region21: #{tpu_custom_call.1} parent=5 // pred_check
        _
      $region22: #{tpu_custom_call.1} parent=5 // pred_check_branch
        %131 = sbr.rel (%p128) target = $region24
      $region23: #{tpu_custom_call.1} parent=5 // pred_region
        %s132 = ssub.s32 %s15, 1
        %s133 = sand.u32 %s42, 1
        %s134 = scalar_lea.sflag [#allocation5], %s133
        %s135 = sand.u32 %s42, 1
        %s136 = smul.addr %s135, 192
        %s137 = scalar_lea.vmem [#allocation4], %s136
        // Predicated region
        $region25: #{tpu_custom_call.1} parent=23 // pred_check
          %p138 = pneg %p55
        $region26: #{tpu_custom_call.1} parent=23 // pred_check_branch
          %140 = sbr.rel (%p138) target = $region28
        $region27: #{tpu_custom_call.1} parent=23 // pred_region
          %141 = dma.done %s134, 3072
        $region28: #{tpu_custom_call.1} parent=23 // pred_fallthru
          _
        %s142 = sand.u32 %s42, 1
        %s143 = scalar_lea.sflag [#allocation5], %s142
        %s144 = sand.u32 %s42, 1
        %s145 = smul.addr %s144, 192
        %s146 = scalar_lea.vmem [#allocation4], %s145
        %p147 = pneg %p55
        %p148 = pneg %p52
        %p149 = pneg %p83
        %p150 = pneg %p80
        %s151 = sand.u32 %s70, 1
        %s152 = scalar_lea.sflag [#allocation6], %s151
        %s153 = sand.u32 %s70, 1
        %s154 = smul.addr %s153, 192
        %s155 = scalar_lea.vmem [#allocation7], %s154
        %s156 = smul.u32 12, %s25
        %s157 = smul.u32 12, %s25
        %s158 = smul.u32 %s24, 384
        %s159 = smul.u32 %s25, 96
        %s160 = sadd.s32 %s158, %s159
        %s161 = smul.u32 %s160, 256
        %v162 = vlaneseq
        %v163 = vshrl.u32 %v162, 7
        %v164 = vadd.s32 %v163, 8
        %v165 = vadd.s32 %v163, 16
        %v166 = vadd.s32 %v163, 24
        %v167 = vadd.s32 %v163, 32
        %v168 = vadd.s32 %v163, 40
        %v169 = vadd.s32 %v163, 48
        %v170 = vadd.s32 %v163, 56
        %v171 = vadd.s32 %v163, 64
        %v172 = vadd.s32 %v163, 72
        %v173 = vadd.s32 %v163, 80
        %v174 = vadd.s32 %v163, 88
        %s175 = sld [smem:[#allocation3]]
        %s176 = smul.u32 %s175, 2654435769
        %v177 = vmul.u32 %v163, 256
        %v178 = vmul.u32 %v164, 256
        %v179 = vmul.u32 %v165, 256
        %v180 = vmul.u32 %v166, 256
        %v181 = vmul.u32 %v167, 256
        %v182 = vmul.u32 %v168, 256
        %v183 = vmul.u32 %v169, 256
        %v184 = vmul.u32 %v170, 256
        %v185 = vmul.u32 %v171, 256
        %v186 = vmul.u32 %v172, 256
        %v187 = vmul.u32 %v173, 256
        %v188 = vmul.u32 %v174, 256
        %v189 = vstv %s161
        %v190 = vadd.s32 %v189, %v177
        %v191 = vadd.s32 %v189, %v178
        %v192 = vadd.s32 %v189, %v179
        %v193 = vadd.s32 %v189, %v180
        %v194 = vadd.s32 %v189, %v181
        %v195 = vadd.s32 %v189, %v182
        %v196 = vadd.s32 %v189, %v183
        %v197 = vadd.s32 %v189, %v184
        %v198 = vadd.s32 %v189, %v185
        %v199 = vadd.s32 %v189, %v186
        %v200 = vadd.s32 %v189, %v187
        %v201 = vadd.s32 %v189, %v188
        %v202 = vstv %s176
        %v203 = vadd.s32 %v190, %v202
        %v204 = vadd.s32 %v191, %v202
        %v205 = vadd.s32 %v192, %v202
        %v206 = vadd.s32 %v193, %v202
        %v207 = vadd.s32 %v194, %v202
        %v208 = vadd.s32 %v195, %v202
        %v209 = vadd.s32 %v196, %v202
        %v210 = vadd.s32 %v197, %v202
        %v211 = vadd.s32 %v198, %v202
        %v212 = vadd.s32 %v199, %v202
        %v213 = vadd.s32 %v200, %v202
        %v214 = vadd.s32 %v201, %v202
        %v215 = vlaneseq
        %v216 = vand.u32 %v215, 127
        %v217 = vadd.s32 %v216, 128
        %v218 = vadd.s32 %v203, %v216
        %v219 = vadd.s32 %v203, %v217
        %v220 = vadd.s32 %v204, %v216
        %v221 = vadd.s32 %v204, %v217
        %v222 = vadd.s32 %v205, %v216
        %v223 = vadd.s32 %v205, %v217
        %v224 = vadd.s32 %v206, %v216
        %v225 = vadd.s32 %v206, %v217
        %v226 = vadd.s32 %v207, %v216
        %v227 = vadd.s32 %v207, %v217
        %v228 = vadd.s32 %v208, %v216
        %v229 = vadd.s32 %v208, %v217
        %v230 = vadd.s32 %v209, %v216
        %v231 = vadd.s32 %v209, %v217
        %v232 = vadd.s32 %v210, %v216
        %v233 = vadd.s32 %v210, %v217
        %v234 = vadd.s32 %v211, %v216
        %v235 = vadd.s32 %v211, %v217
        %v236 = vadd.s32 %v212, %v216
        %v237 = vadd.s32 %v212, %v217
        %v238 = vadd.s32 %v213, %v216
        %v239 = vadd.s32 %v213, %v217
        %v240 = vadd.s32 %v214, %v216
        %v241 = vadd.s32 %v214, %v217
        %v242 = vshrl.u32 %v218, 16
        %v243 = vshrl.u32 %v219, 16
        %v244 = vshrl.u32 %v220, 16
        %v245 = vshrl.u32 %v221, 16
        %v246 = vshrl.u32 %v222, 16
        %v247 = vshrl.u32 %v223, 16
        %v248 = vshrl.u32 %v224, 16
        %v249 = vshrl.u32 %v225, 16
        %v250 = vshrl.u32 %v226, 16
        %v251 = vshrl.u32 %v227, 16
        %v252 = vshrl.u32 %v228, 16
        %v253 = vshrl.u32 %v229, 16
        %v254 = vshrl.u32 %v230, 16
        %v255 = vshrl.u32 %v231, 16
        %v256 = vshrl.u32 %v232, 16
        %v257 = vshrl.u32 %v233, 16
        %v258 = vshrl.u32 %v234, 16
        %v259 = vshrl.u32 %v235, 16
        %v260 = vshrl.u32 %v236, 16
        %v261 = vshrl.u32 %v237, 16
        %v262 = vshrl.u32 %v238, 16
        %v263 = vshrl.u32 %v239, 16
        %v264 = vshrl.u32 %v240, 16
        %v265 = vshrl.u32 %v241, 16
        %v266 = vxor.u32 %v218, %v242
        %v267 = vxor.u32 %v219, %v243
        %v268 = vxor.u32 %v220, %v244
        %v269 = vxor.u32 %v221, %v245
        %v270 = vxor.u32 %v222, %v246
        %v271 = vxor.u32 %v223, %v247
        %v272 = vxor.u32 %v224, %v248
        %v273 = vxor.u32 %v225, %v249
        %v274 = vxor.u32 %v226, %v250
        %v275 = vxor.u32 %v227, %v251
        %v276 = vxor.u32 %v228, %v252
        %v277 = vxor.u32 %v229, %v253
        %v278 = vxor.u32 %v230, %v254
        %v279 = vxor.u32 %v231, %v255
        %v280 = vxor.u32 %v232, %v256
        %v281 = vxor.u32 %v233, %v257
        %v282 = vxor.u32 %v234, %v258
        %v283 = vxor.u32 %v235, %v259
        %v284 = vxor.u32 %v236, %v260
        %v285 = vxor.u32 %v237, %v261
        %v286 = vxor.u32 %v238, %v262
        %v287 = vxor.u32 %v239, %v263
        %v288 = vxor.u32 %v240, %v264
        %v289 = vxor.u32 %v241, %v265
        %v290 = vmul.u32 %v266, 2146121005
        %v291 = vmul.u32 %v267, 2146121005
        %v292 = vmul.u32 %v268, 2146121005
        %v293 = vmul.u32 %v269, 2146121005
        %v294 = vmul.u32 %v270, 2146121005
        %v295 = vmul.u32 %v271, 2146121005
        %v296 = vmul.u32 %v272, 2146121005
        %v297 = vmul.u32 %v273, 2146121005
        %v298 = vmul.u32 %v274, 2146121005
        %v299 = vmul.u32 %v275, 2146121005
        %v300 = vmul.u32 %v276, 2146121005
        %v301 = vmul.u32 %v277, 2146121005
        %v302 = vmul.u32 %v278, 2146121005
        %v303 = vmul.u32 %v279, 2146121005
        %v304 = vmul.u32 %v280, 2146121005
        %v305 = vmul.u32 %v281, 2146121005
        %v306 = vmul.u32 %v282, 2146121005
        %v307 = vmul.u32 %v283, 2146121005
        %v308 = vmul.u32 %v284, 2146121005
        %v309 = vmul.u32 %v285, 2146121005
        %v310 = vmul.u32 %v286, 2146121005
        %v311 = vmul.u32 %v287, 2146121005
        %v312 = vmul.u32 %v288, 2146121005
        %v313 = vmul.u32 %v289, 2146121005
        %v314 = vshrl.u32 %v290, 15
        %v315 = vshrl.u32 %v291, 15
        %v316 = vshrl.u32 %v292, 15
        %v317 = vshrl.u32 %v293, 15
        %v318 = vshrl.u32 %v294, 15
        %v319 = vshrl.u32 %v295, 15
        %v320 = vshrl.u32 %v296, 15
        %v321 = vshrl.u32 %v297, 15
        %v322 = vshrl.u32 %v298, 15
        %v323 = vshrl.u32 %v299, 15
        %v324 = vshrl.u32 %v300, 15
        %v325 = vshrl.u32 %v301, 15
        %v326 = vshrl.u32 %v302, 15
        %v327 = vshrl.u32 %v303, 15
        %v328 = vshrl.u32 %v304, 15
        %v329 = vshrl.u32 %v305, 15
        %v330 = vshrl.u32 %v306, 15
        %v331 = vshrl.u32 %v307, 15
        %v332 = vshrl.u32 %v308, 15
        %v333 = vshrl.u32 %v309, 15
        %v334 = vshrl.u32 %v310, 15
        %v335 = vshrl.u32 %v311, 15
        %v336 = vshrl.u32 %v312, 15
        %v337 = vshrl.u32 %v313, 15
        %v338 = vxor.u32 %v290, %v314
        %v339 = vxor.u32 %v291, %v315
        %v340 = vxor.u32 %v292, %v316
        %v341 = vxor.u32 %v293, %v317
        %v342 = vxor.u32 %v294, %v318
        %v343 = vxor.u32 %v295, %v319
        %v344 = vxor.u32 %v296, %v320
        %v345 = vxor.u32 %v297, %v321
        %v346 = vxor.u32 %v298, %v322
        %v347 = vxor.u32 %v299, %v323
        %v348 = vxor.u32 %v300, %v324
        %v349 = vxor.u32 %v301, %v325
        %v350 = vxor.u32 %v302, %v326
        %v351 = vxor.u32 %v303, %v327
        %v352 = vxor.u32 %v304, %v328
        %v353 = vxor.u32 %v305, %v329
        %v354 = vxor.u32 %v306, %v330
        %v355 = vxor.u32 %v307, %v331
        %v356 = vxor.u32 %v308, %v332
        %v357 = vxor.u32 %v309, %v333
        %v358 = vxor.u32 %v310, %v334
        %v359 = vxor.u32 %v311, %v335
        %v360 = vxor.u32 %v312, %v336
        %v361 = vxor.u32 %v313, %v337
        %v362 = vmul.u32 %v338, 2221713035
        %v363 = vmul.u32 %v339, 2221713035
        %v364 = vmul.u32 %v340, 2221713035
        %v365 = vmul.u32 %v341, 2221713035
        %v366 = vmul.u32 %v342, 2221713035
        %v367 = vmul.u32 %v343, 2221713035
        %v368 = vmul.u32 %v344, 2221713035
        %v369 = vmul.u32 %v345, 2221713035
        %v370 = vmul.u32 %v346, 2221713035
        %v371 = vmul.u32 %v347, 2221713035
        %v372 = vmul.u32 %v348, 2221713035
        %v373 = vmul.u32 %v349, 2221713035
        %v374 = vmul.u32 %v350, 2221713035
        %v375 = vmul.u32 %v351, 2221713035
        %v376 = vmul.u32 %v352, 2221713035
        %v377 = vmul.u32 %v353, 2221713035
        %v378 = vmul.u32 %v354, 2221713035
        %v379 = vmul.u32 %v355, 2221713035
        %v380 = vmul.u32 %v356, 2221713035
        %v381 = vmul.u32 %v357, 2221713035
        %v382 = vmul.u32 %v358, 2221713035
        %v383 = vmul.u32 %v359, 2221713035
        %v384 = vmul.u32 %v360, 2221713035
        %v385 = vmul.u32 %v361, 2221713035
        %v386 = vshrl.u32 %v362, 16
        %v387 = vshrl.u32 %v363, 16
        %v388 = vshrl.u32 %v364, 16
        %v389 = vshrl.u32 %v365, 16
        %v390 = vshrl.u32 %v366, 16
        %v391 = vshrl.u32 %v367, 16
        %v392 = vshrl.u32 %v368, 16
        %v393 = vshrl.u32 %v369, 16
        %v394 = vshrl.u32 %v370, 16
        %v395 = vshrl.u32 %v371, 16
        %v396 = vshrl.u32 %v372, 16
        %v397 = vshrl.u32 %v373, 16
        %v398 = vshrl.u32 %v374, 16
        %v399 = vshrl.u32 %v375, 16
        %v400 = vshrl.u32 %v376, 16
        %v401 = vshrl.u32 %v377, 16
        %v402 = vshrl.u32 %v378, 16
        %v403 = vshrl.u32 %v379, 16
        %v404 = vshrl.u32 %v380, 16
        %v405 = vshrl.u32 %v381, 16
        %v406 = vshrl.u32 %v382, 16
        %v407 = vshrl.u32 %v383, 16
        %v408 = vshrl.u32 %v384, 16
        %v409 = vshrl.u32 %v385, 16
        %v410 = vxor.u32 %v362, %v386
        %v411 = vxor.u32 %v363, %v387
        %v412 = vxor.u32 %v364, %v388
        %v413 = vxor.u32 %v365, %v389
        %v414 = vxor.u32 %v366, %v390
        %v415 = vxor.u32 %v367, %v391
        %v416 = vxor.u32 %v368, %v392
        %v417 = vxor.u32 %v369, %v393
        %v418 = vxor.u32 %v370, %v394
        %v419 = vxor.u32 %v371, %v395
        %v420 = vxor.u32 %v372, %v396
        %v421 = vxor.u32 %v373, %v397
        %v422 = vxor.u32 %v374, %v398
        %v423 = vxor.u32 %v375, %v399
        %v424 = vxor.u32 %v376, %v400
        %v425 = vxor.u32 %v377, %v401
        %v426 = vxor.u32 %v378, %v402
        %v427 = vxor.u32 %v379, %v403
        %v428 = vxor.u32 %v380, %v404
        %v429 = vxor.u32 %v381, %v405
        %v430 = vxor.u32 %v382, %v406
        %v431 = vxor.u32 %v383, %v407
        %v432 = vxor.u32 %v384, %v408
        %v433 = vxor.u32 %v385, %v409
        %v434 = vshrl.u32 %v410, 1
        %v435 = vshrl.u32 %v411, 1
        %v436 = vshrl.u32 %v412, 1
        %v437 = vshrl.u32 %v413, 1
        %v438 = vshrl.u32 %v414, 1
        %v439 = vshrl.u32 %v415, 1
        %v440 = vshrl.u32 %v416, 1
        %v441 = vshrl.u32 %v417, 1
        %v442 = vshrl.u32 %v418, 1
        %v443 = vshrl.u32 %v419, 1
        %v444 = vshrl.u32 %v420, 1
        %v445 = vshrl.u32 %v421, 1
        %v446 = vshrl.u32 %v422, 1
        %v447 = vshrl.u32 %v423, 1
        %v448 = vshrl.u32 %v424, 1
        %v449 = vshrl.u32 %v425, 1
        %v450 = vshrl.u32 %v426, 1
        %v451 = vshrl.u32 %v427, 1
        %v452 = vshrl.u32 %v428, 1
        %v453 = vshrl.u32 %v429, 1
        %v454 = vshrl.u32 %v430, 1
        %v455 = vshrl.u32 %v431, 1
        %v456 = vshrl.u32 %v432, 1
        %v457 = vshrl.u32 %v433, 1
        %vm458 = vcmp.ge.s32.totalorder %v434, 214748365
        %vm459 = vcmp.ge.s32.totalorder %v435, 214748365
        %vm460 = vcmp.ge.s32.totalorder %v436, 214748365
        %vm461 = vcmp.ge.s32.totalorder %v437, 214748365
        %vm462 = vcmp.ge.s32.totalorder %v438, 214748365
        %vm463 = vcmp.ge.s32.totalorder %v439, 214748365
        %vm464 = vcmp.ge.s32.totalorder %v440, 214748365
        %vm465 = vcmp.ge.s32.totalorder %v441, 214748365
        %vm466 = vcmp.ge.s32.totalorder %v442, 214748365
        %vm467 = vcmp.ge.s32.totalorder %v443, 214748365
        %vm468 = vcmp.ge.s32.totalorder %v444, 214748365
        %vm469 = vcmp.ge.s32.totalorder %v445, 214748365
        %vm470 = vcmp.ge.s32.totalorder %v446, 214748365
        %vm471 = vcmp.ge.s32.totalorder %v447, 214748365
        %vm472 = vcmp.ge.s32.totalorder %v448, 214748365
        %vm473 = vcmp.ge.s32.totalorder %v449, 214748365
        %vm474 = vcmp.ge.s32.totalorder %v450, 214748365
        %vm475 = vcmp.ge.s32.totalorder %v451, 214748365
        %vm476 = vcmp.ge.s32.totalorder %v452, 214748365
        %vm477 = vcmp.ge.s32.totalorder %v453, 214748365
        %vm478 = vcmp.ge.s32.totalorder %v454, 214748365
        %vm479 = vcmp.ge.s32.totalorder %v455, 214748365
        %vm480 = vcmp.ge.s32.totalorder %v456, 214748365
        %vm481 = vcmp.ge.s32.totalorder %v457, 214748365
        %v482 = vld [vmem:[%s137] sm:$0xff]
        %v483 = vld [vmem:[%s137 + $0x8] sm:$0xff]
        %v484 = vld [vmem:[%s137 + $0x10] sm:$0xff]
        %v485 = vld [vmem:[%s137 + $0x18] sm:$0xff]
        %v486 = vld [vmem:[%s137 + $0x20] sm:$0xff]
        %v487 = vld [vmem:[%s137 + $0x28] sm:$0xff]
        %v488 = vld [vmem:[%s137 + $0x30] sm:$0xff]
        %v489 = vld [vmem:[%s137 + $0x38] sm:$0xff]
        %v490 = vld [vmem:[%s137 + $0x40] sm:$0xff]
        %v491 = vld [vmem:[%s137 + $0x48] sm:$0xff]
        %v492 = vld [vmem:[%s137 + $0x50] sm:$0xff]
        %v493 = vld [vmem:[%s137 + $0x58] sm:$0xff]
        %v494 = vld [vmem:[%s137 + $0x60] sm:$0xff]
        %v495 = vld [vmem:[%s137 + $0x68] sm:$0xff]
        %v496 = vld [vmem:[%s137 + $0x70] sm:$0xff]
        %v497 = vld [vmem:[%s137 + $0x78] sm:$0xff]
        %v498 = vld [vmem:[%s137 + $0x80] sm:$0xff]
        %v499 = vld [vmem:[%s137 + $0x88] sm:$0xff]
        %v500 = vld [vmem:[%s137 + $0x90] sm:$0xff]
        %v501 = vld [vmem:[%s137 + $0x98] sm:$0xff]
        %v502 = vld [vmem:[%s137 + $0xa0] sm:$0xff]
        %v503 = vld [vmem:[%s137 + $0xa8] sm:$0xff]
        %v504 = vld [vmem:[%s137 + $0xb0] sm:$0xff]
        %v505 = vld [vmem:[%s137 + $0xb8] sm:$0xff]
        %v506 = vmul.f32 %v482, 1.1111112
        %v507 = vmul.f32 %v483, 1.1111112
        %v508 = vmul.f32 %v484, 1.1111112
        %v509 = vmul.f32 %v485, 1.1111112
        %v510 = vmul.f32 %v486, 1.1111112
        %v511 = vmul.f32 %v487, 1.1111112
        %v512 = vmul.f32 %v488, 1.1111112
        %v513 = vmul.f32 %v489, 1.1111112
        %v514 = vmul.f32 %v490, 1.1111112
        %v515 = vmul.f32 %v491, 1.1111112
        %v516 = vmul.f32 %v492, 1.1111112
        %v517 = vmul.f32 %v493, 1.1111112
        %v518 = vmul.f32 %v494, 1.1111112
        %v519 = vmul.f32 %v495, 1.1111112
        %v520 = vmul.f32 %v496, 1.1111112
        %v521 = vmul.f32 %v497, 1.1111112
        %v522 = vmul.f32 %v498, 1.1111112
        %v523 = vmul.f32 %v499, 1.1111112
        %v524 = vmul.f32 %v500, 1.1111112
        %v525 = vmul.f32 %v501, 1.1111112
        %v526 = vmul.f32 %v502, 1.1111112
        %v527 = vmul.f32 %v503, 1.1111112
        %v528 = vmul.f32 %v504, 1.1111112
        %v529 = vmul.f32 %v505, 1.1111112
        %v530 = vsel %vm458, %v506, 0.0
        %v531 = vsel %vm459, %v507, 0.0
        %v532 = vsel %vm460, %v508, 0.0
        %v533 = vsel %vm461, %v509, 0.0
        %v534 = vsel %vm462, %v510, 0.0
        %v535 = vsel %vm463, %v511, 0.0
        %v536 = vsel %vm464, %v512, 0.0
        %v537 = vsel %vm465, %v513, 0.0
        %v538 = vsel %vm466, %v514, 0.0
        %v539 = vsel %vm467, %v515, 0.0
        %v540 = vsel %vm468, %v516, 0.0
        %v541 = vsel %vm469, %v517, 0.0
        %v542 = vsel %vm470, %v518, 0.0
        %v543 = vsel %vm471, %v519, 0.0
        %v544 = vsel %vm472, %v520, 0.0
        %v545 = vsel %vm473, %v521, 0.0
        %v546 = vsel %vm474, %v522, 0.0
        %v547 = vsel %vm475, %v523, 0.0
        %v548 = vsel %vm476, %v524, 0.0
        %v549 = vsel %vm477, %v525, 0.0
        %v550 = vsel %vm478, %v526, 0.0
        %v551 = vsel %vm479, %v527, 0.0
        %v552 = vsel %vm480, %v528, 0.0
        %v553 = vsel %vm481, %v529, 0.0
        %554 = vst [vmem:[%s155] sm:$0xff] %v530
        %555 = vst [vmem:[%s155 + $0x8] sm:$0xff] %v531
        %556 = vst [vmem:[%s155 + $0x10] sm:$0xff] %v532
        %557 = vst [vmem:[%s155 + $0x18] sm:$0xff] %v533
        %558 = vst [vmem:[%s155 + $0x20] sm:$0xff] %v534
        %559 = vst [vmem:[%s155 + $0x28] sm:$0xff] %v535
        %560 = vst [vmem:[%s155 + $0x30] sm:$0xff] %v536
        %561 = vst [vmem:[%s155 + $0x38] sm:$0xff] %v537
        %562 = vst [vmem:[%s155 + $0x40] sm:$0xff] %v538
        %563 = vst [vmem:[%s155 + $0x48] sm:$0xff] %v539
        %564 = vst [vmem:[%s155 + $0x50] sm:$0xff] %v540
        %565 = vst [vmem:[%s155 + $0x58] sm:$0xff] %v541
        %566 = vst [vmem:[%s155 + $0x60] sm:$0xff] %v542
        %567 = vst [vmem:[%s155 + $0x68] sm:$0xff] %v543
        %568 = vst [vmem:[%s155 + $0x70] sm:$0xff] %v544
        %569 = vst [vmem:[%s155 + $0x78] sm:$0xff] %v545
        %570 = vst [vmem:[%s155 + $0x80] sm:$0xff] %v546
        %571 = vst [vmem:[%s155 + $0x88] sm:$0xff] %v547
        %572 = vst [vmem:[%s155 + $0x90] sm:$0xff] %v548
        %573 = vst [vmem:[%s155 + $0x98] sm:$0xff] %v549
        %574 = vst [vmem:[%s155 + $0xa0] sm:$0xff] %v550
        %575 = vst [vmem:[%s155 + $0xa8] sm:$0xff] %v551
        %576 = vst [vmem:[%s155 + $0xb0] sm:$0xff] %v552
        %577 = vst [vmem:[%s155 + $0xb8] sm:$0xff] %v553
        %s578 = sand.u32 %s70, 1
        %s579 = scalar_lea.sflag [#allocation6], %s578
        %s580 = sand.u32 %s70, 1
        %s581 = smul.addr %s580, 192
        %s582 = scalar_lea.vmem [#allocation7], %s581
        // Predicated region
        $region29: #{tpu_custom_call.1} parent=23 // pred_check
          %p583 = pneg %p80
        $region30: #{tpu_custom_call.1} parent=23 // pred_check_branch
          %585 = sbr.rel (%p583) target = $region32
        $region31: #{tpu_custom_call.1} parent=23 // pred_region
          %s586 = smul.u32 12, %s25
          %s588 = ssub.s32 3072, 3072
          %589 = vsyncadd %s579, %s588
          %s590 = smul.addr %s586, 2
          %s591 = smul.addr %s24, 96
          %s592 = sadd.s32 %s590, %s591
          %s593 = smul.addr %s592, 128
          %s594 = scalar_lea.hbm %s2, %s593
          %s595 = sshll.u32 %s582, 4
          %s596 = int_to_ptr.vmem [resolvable:$true] %s595
          %601 = dma.vmem_to_hbm [thread:$0]  %s596, 3072, %s594, %s579, 256, 256, 16
        $region32: #{tpu_custom_call.1} parent=23 // pred_fallthru
          _
      $region24: #{tpu_custom_call.1} parent=5 // pred_fallthru
        _
      %p602 = scmp.le.s32.totalorder 2, %s15
      // Predicated region
      $region33: #{tpu_custom_call.1} parent=5 // pred_check
        %p603 = pneg %p602
      $region34: #{tpu_custom_call.1} parent=5 // pred_check_branch
        %605 = sbr.rel (%p603) target = $region36
      $region35: #{tpu_custom_call.1} parent=5 // pred_region
        %s606 = ssub.s32 %s15, 2
        // Predicated region
        $region37: #{tpu_custom_call.1} parent=35 // pred_check
          %p607 = pneg %p86
        $region38: #{tpu_custom_call.1} parent=35 // pred_check_branch
          %609 = sbr.rel (%p607) target = $region40
        $region39: #{tpu_custom_call.1} parent=35 // pred_region
          %s610 = sand.u32 %s71, 1
          %s611 = scalar_lea.sflag [#allocation6], %s610
          %s612 = sand.u32 %s71, 1
          %s613 = smul.addr %s612, 192
          %s614 = scalar_lea.vmem [#allocation7], %s613
          %615 = dma.done %s611, 3072
        $region40: #{tpu_custom_call.1} parent=35 // pred_fallthru
          _
      $region36: #{tpu_custom_call.1} parent=5 // pred_fallthru
        _
    $region6: #{tpu_custom_call.1} parent=1 // loop_footer
      %s19 = sadd.s32 1, %s15
    $region7: #{tpu_custom_call.1} parent=1 // loop_footer_branch
      %14 = sbr.rel target = $region3
    $region8: #{tpu_custom_call.1} parent=1 // loop_exit
      _
    %616 = vsyncpa [#allocation5], 1
    %s617 = scalar_lea.sflag [#allocation5], 1
    %618 = vsyncpa %s617, 1
    %619 = vsyncpa [#allocation6], 1
    %s620 = scalar_lea.sflag [#allocation6], 1
    %621 = vsyncpa %s620, 1

</llo_original>
